<compile_context>
chip_gen: v7x
topology: tpu7x:2x2x1
jax: 0.10.0
libtpu: 0.0.40
codegen_flags: <defaults>
</compile_context>

<pallas_src>
import jax
import jax.numpy as jnp
from jax import lax
from jax.experimental import pallas as pl
from jax.experimental.pallas import tpu as pltpu

BN_EPS = 1e-5
LANE = 128

# Contract the last dim of both operands: A (N, K) x W (M, K) -> (N, M), i.e. A @ W.T
# without materializing the transpose.
_DN_T = (((1,), (1,)), ((), ()))


def _vecfield_kernel(x_ref, wfi_ref, bfi_ref, wint_ref, bint_ref,
                     gamma_ref, beta_ref, wc_ref, bc_ref, out_ref):
    x = x_ref[0]                                               # (N, Dp) f32

    # feat = fi(x) = x @ W_fi.T + b_fi                          -> (N, Fp)
    feat = lax.dot_general(x, wfi_ref[...], _DN_T,
                           preferred_element_type=jnp.float32) + bfi_ref[...]

    # interm linear + ReLU                                      -> (N, Ip)
    h = lax.dot_general(feat, wint_ref[...], _DN_T,
                        preferred_element_type=jnp.float32) + bint_ref[...]
    h = jnp.maximum(h, 0.0)

    # BatchNorm1d (training mode, biased variance) fused into one scale/shift.
    inv_n = 1.0 / h.shape[0]
    mean = jnp.sum(h, axis=0, keepdims=True) * inv_n
    mean_sq = jnp.sum(h * h, axis=0, keepdims=True) * inv_n
    var = mean_sq - mean * mean
    s = gamma_ref[...] * lax.rsqrt(var + BN_EPS)
    b = beta_ref[...] - mean * s
    h_bn = h * s + b

    # coeffs linear                                             -> (N, Fp)
    coeffs = lax.dot_general(h_bn, wc_ref[...], _DN_T,
                             preferred_element_type=jnp.float32) + bc_ref[...]

    # VJP of the linear feature map fi at x with cotangent `coeffs`:
    #   d/dx <coeffs, fi(x)> = coeffs @ W_fi                    -> (N, Dp)
    new_vecs = jnp.dot(coeffs, wfi_ref[...],
                       preferred_element_type=jnp.float32)

    # Sphere manifold.proju(x, u) = u - <x, u> x
    inner = jnp.sum(x * new_vecs, axis=-1, keepdims=True)
    out_ref[0] = (new_vecs - inner * x).astype(out_ref.dtype)


def _round_up(v, m):
    return (v + m - 1) // m * m


def _pad_last(a, target):
    pad = target - a.shape[-1]
    if pad == 0:
        return a
    cfg = [(0, 0)] * (a.ndim - 1) + [(0, pad)]
    return jnp.pad(a, cfg)


def _pad2(a, rows, cols):
    return jnp.pad(a, ((0, rows - a.shape[0]), (0, cols - a.shape[1])))


def feature_map_vecfield_simple(x, params):
    """x: (N, D) or (B, N, D) float32 — B independent module invocations, each a
    batch of N points.  params: dict of weights in PyTorch Linear layout."""
    single = (x.ndim == 2)
    if single:
        x = x[None]
    B, N, D = x.shape
    feat_dim, _ = params["w_fi"].shape
    interm_dim = params["w_interm"].shape[0]

    # Zero-pad feature dims to lane-dense (multiples of 128).  Padding is exact:
    # padded weight rows/cols, biases, gamma and beta are all zero, so the valid
    # outputs are unchanged and the padded output columns are exactly zero.
    Dp = _round_up(D, LANE)
    Fp = _round_up(feat_dim, LANE)
    Ip = _round_up(interm_dim, LANE)

    x_p = _pad_last(x, Dp)
    w_fi = _pad2(params["w_fi"], Fp, Dp)
    b_fi = _pad_last(params["b_fi"], Fp)
    w_int = _pad2(params["w_interm"], Ip, Fp)
    b_int = _pad_last(params["b_interm"], Ip)
    gamma = _pad_last(params["bn_gamma"], Ip)
    beta = _pad_last(params["bn_beta"], Ip)
    w_c = _pad2(params["w_coeffs"], Fp, Ip)
    b_c = _pad_last(params["b_coeffs"], Fp)

    def resident(arr):
        nd = arr.ndim
        return pl.BlockSpec(arr.shape, lambda bb: (0,) * nd)

    x_spec = pl.BlockSpec((1, N, Dp), lambda bb: (bb, 0, 0))
    out_spec = pl.BlockSpec((1, N, Dp), lambda bb: (bb, 0, 0))

    out_p = pl.pallas_call(
        _vecfield_kernel,
        out_shape=jax.ShapeDtypeStruct((B, N, Dp), x.dtype),
        grid=(B,),
        in_specs=[x_spec,
                  resident(w_fi), resident(b_fi),
                  resident(w_int), resident(b_int),
                  resident(gamma), resident(beta),
                  resident(w_c), resident(b_c)],
        out_specs=out_spec,
        compiler_params=pltpu.CompilerParams(
            dimension_semantics=("parallel",)),
    )(x_p, w_fi, b_fi, w_int, b_int, gamma, beta, w_c, b_c)

    out = out_p[..., :D]
    return out[0] if single else out


def _reference(x, params):
    """Pure-JAX reference (single invocation, x: (N, D)) using jax.vjp for the
    autograd.grad step."""
    w_fi, b_fi = params["w_fi"], params["b_fi"]

    def fi(z):
        return z @ w_fi.T + b_fi

    feat = fi(x)
    h = jax.nn.relu(feat @ params["w_interm"].T + params["b_interm"])
    mean = jnp.mean(h, axis=0, keepdims=True)
    var = jnp.mean((h - mean) ** 2, axis=0, keepdims=True)
    h_bn = (h - mean) / jnp.sqrt(var + BN_EPS)
    h_bn = h_bn * params["bn_gamma"] + params["bn_beta"]
    coeffs = h_bn @ params["w_coeffs"].T + params["b_coeffs"]

    _, vjp_fn = jax.vjp(fi, x)
    (new_vecs,) = vjp_fn(coeffs)

    inner = jnp.sum(x * new_vecs, axis=-1, keepdims=True)
    return new_vecs - inner * x


def make_params(key, d, feat_dim, interm_dim):
    """Deterministic synthetic parameters (shapes match the nn.Module __init__)."""
    ks = jax.random.split(key, 6)
    scale_fi = 1.0 / jnp.sqrt(d)
    scale_int = 1.0 / jnp.sqrt(feat_dim)
    scale_c = 1.0 / jnp.sqrt(interm_dim)
    return {
        # fi: linear feature map R^D -> R^feat_dim
        "w_fi": jax.random.uniform(ks[0], (feat_dim, d), jnp.float32, -scale_fi, scale_fi),
        "b_fi": jax.random.uniform(ks[1], (1, feat_dim), jnp.float32, -scale_fi, scale_fi),
        # interm = nn.Linear(feat_dim, interm_dim)
        "w_interm": jax.random.uniform(ks[2], (interm_dim, feat_dim), jnp.float32, -scale_int, scale_int),
        "b_interm": jax.random.uniform(ks[3], (1, interm_dim), jnp.float32, -scale_int, scale_int),
        # bn1 = nn.BatchNorm1d(interm_dim) affine params (default init gamma=1, beta=0)
        "bn_gamma": jnp.ones((1, interm_dim), jnp.float32),
        "bn_beta": jnp.zeros((1, interm_dim), jnp.float32),
        # coeffs = nn.Linear(interm_dim, feat_dim)
        "w_coeffs": jax.random.uniform(ks[4], (feat_dim, interm_dim), jnp.float32, -scale_c, scale_c),
        "b_coeffs": jax.random.uniform(ks[5], (1, feat_dim), jnp.float32, -scale_c, scale_c),
    }


if __name__ == "__main__":
    key = jax.random.PRNGKey(0)
    B = 4                   # independent module invocations stacked on the grid axis
    N, D = 8, 32            # per-invocation batch, ambient manifold dimension
    FEAT_DIM = 16           # output dim of fi
    INTERM_DIM = 64         # hidden dim of the coefficient MLP

    kx, kp = jax.random.split(key)
    # points roughly on the unit sphere (the manifold the proju belongs to)
    x = jax.random.normal(kx, (B, N, D), jnp.float32)
    x = x / jnp.linalg.norm(x, axis=-1, keepdims=True)

    params = make_params(kp, D, FEAT_DIM, INTERM_DIM)

    out = feature_map_vecfield_simple(x, params)
    out = jax.block_until_ready(out)

    ref = jax.vmap(lambda xi: _reference(xi, params))(x)
    assert out.shape == (B, N, D) and out.dtype == jnp.float32
    assert jnp.allclose(out, ref, atol=1e-4, rtol=1e-4), "mismatch vs JAX reference"

    # also exercise the single-invocation (N, D) path
    out1 = jax.block_until_ready(feature_map_vecfield_simple(x[0], params))
    assert out1.shape == (N, D)
    assert jnp.allclose(out1, ref[0], atol=1e-4, rtol=1e-4), "single-call mismatch"

    print("KERNEL_OK")
</pallas_src>

<mosaic_0001>
module attributes {stable_mosaic.version = 11 : i64} {
  func.func @_vecfield_kernel(%arg0: i32, %arg1: memref<1x8x128xf32, #tpu.memory_space<vmem>>, %arg2: memref<128x128xf32, #tpu.memory_space<vmem>>, %arg3: memref<1x128xf32, #tpu.memory_space<vmem>>, %arg4: memref<128x128xf32, #tpu.memory_space<vmem>>, %arg5: memref<1x128xf32, #tpu.memory_space<vmem>>, %arg6: memref<1x128xf32, #tpu.memory_space<vmem>>, %arg7: memref<1x128xf32, #tpu.memory_space<vmem>>, %arg8: memref<128x128xf32, #tpu.memory_space<vmem>>, %arg9: memref<1x128xf32, #tpu.memory_space<vmem>>, %arg10: memref<1x8x128xf32, #tpu.memory_space<vmem>>) attributes {dimension_semantics = [#tpu.dimension_semantics<parallel>], iteration_bounds = array<i64: 4>, scalar_prefetch = 0 : i64, scratch_operands = 0 : i64, tpu.core_type = #tpu.core_type<tc>, window_params = [{transform_indices = @transform_0, window_bounds = array<i64: 1, 8, 128>}, {pipeline_mode = #tpu.pipeline_mode<synchronous>, transform_indices = @transform_1, window_bounds = array<i64: 128, 128>}, {pipeline_mode = #tpu.pipeline_mode<synchronous>, transform_indices = @transform_2, window_bounds = array<i64: 1, 128>}, {pipeline_mode = #tpu.pipeline_mode<synchronous>, transform_indices = @transform_3, window_bounds = array<i64: 128, 128>}, {pipeline_mode = #tpu.pipeline_mode<synchronous>, transform_indices = @transform_4, window_bounds = array<i64: 1, 128>}, {pipeline_mode = #tpu.pipeline_mode<synchronous>, transform_indices = @transform_5, window_bounds = array<i64: 1, 128>}, {pipeline_mode = #tpu.pipeline_mode<synchronous>, transform_indices = @transform_6, window_bounds = array<i64: 1, 128>}, {pipeline_mode = #tpu.pipeline_mode<synchronous>, transform_indices = @transform_7, window_bounds = array<i64: 128, 128>}, {pipeline_mode = #tpu.pipeline_mode<synchronous>, transform_indices = @transform_8, window_bounds = array<i64: 1, 128>}, {transform_indices = @transform_9, window_bounds = array<i64: 1, 8, 128>}]} {
    %c0 = arith.constant 0 : index
    %c0_0 = arith.constant 0 : index
    %c0_1 = arith.constant 0 : index
    %0 = vector.load %arg1[%c0, %c0_0, %c0_1] : memref<1x8x128xf32, #tpu.memory_space<vmem>>, vector<1x8x128xf32>
    %1 = vector.shape_cast %0 : vector<1x8x128xf32> to vector<8x128xf32>
    %c0_2 = arith.constant 0 : index
    %c0_3 = arith.constant 0 : index
    %2 = vector.load %arg2[%c0_2, %c0_3] : memref<128x128xf32, #tpu.memory_space<vmem>>, vector<128x128xf32>
    %cst = arith.constant dense<0.000000e+00> : vector<8x128xf32>
    %3 = tpu.matmul %1, %2, %cst {dimension_numbers = #tpu.dot_dimension_numbers<[1], [1], [0], [0], [0, 0, 1, 0], [], []>} : vector<8x128xf32>, vector<128x128xf32>, vector<8x128xf32> -> vector<8x128xf32>
    %c0_4 = arith.constant 0 : index
    %c0_5 = arith.constant 0 : index
    %4 = vector.load %arg3[%c0_4, %c0_5] : memref<1x128xf32, #tpu.memory_space<vmem>>, vector<1x128xf32>
    %5 = vector.broadcast %4 : vector<1x128xf32> to vector<8x128xf32>
    %6 = arith.addf %3, %5 : vector<8x128xf32>
    %c0_6 = arith.constant 0 : index
    %c0_7 = arith.constant 0 : index
    %7 = vector.load %arg4[%c0_6, %c0_7] : memref<128x128xf32, #tpu.memory_space<vmem>>, vector<128x128xf32>
    %cst_8 = arith.constant dense<0.000000e+00> : vector<8x128xf32>
    %8 = tpu.matmul %6, %7, %cst_8 {dimension_numbers = #tpu.dot_dimension_numbers<[1], [1], [0], [0], [0, 0, 1, 0], [], []>} : vector<8x128xf32>, vector<128x128xf32>, vector<8x128xf32> -> vector<8x128xf32>
    %c0_9 = arith.constant 0 : index
    %c0_10 = arith.constant 0 : index
    %9 = vector.load %arg5[%c0_9, %c0_10] : memref<1x128xf32, #tpu.memory_space<vmem>>, vector<1x128xf32>
    %10 = vector.broadcast %9 : vector<1x128xf32> to vector<8x128xf32>
    %11 = arith.addf %8, %10 : vector<8x128xf32>
    %cst_11 = arith.constant 0.000000e+00 : f32
    %12 = vector.broadcast %cst_11 : f32 to vector<8x128xf32>
    %13 = arith.maximumf %11, %12 : vector<8x128xf32>
    %cst_12 = arith.constant dense<0.000000e+00> : vector<128xf32>
    %14 = vector.multi_reduction <add>, %13, %cst_12 [0] : vector<8x128xf32> to vector<128xf32>
    %15 = vector.shape_cast %14 : vector<128xf32> to vector<1x128xf32>
    %cst_13 = arith.constant 1.250000e-01 : f32
    %16 = vector.broadcast %cst_13 : f32 to vector<1x128xf32>
    %17 = arith.mulf %15, %16 : vector<1x128xf32>
    %18 = arith.mulf %13, %13 : vector<8x128xf32>
    %cst_14 = arith.constant dense<0.000000e+00> : vector<128xf32>
    %19 = vector.multi_reduction <add>, %18, %cst_14 [0] : vector<8x128xf32> to vector<128xf32>
    %20 = vector.shape_cast %19 : vector<128xf32> to vector<1x128xf32>
    %cst_15 = arith.constant 1.250000e-01 : f32
    %21 = vector.broadcast %cst_15 : f32 to vector<1x128xf32>
    %22 = arith.mulf %20, %21 : vector<1x128xf32>
    %23 = arith.mulf %17, %17 : vector<1x128xf32>
    %24 = arith.subf %22, %23 : vector<1x128xf32>
    %c0_16 = arith.constant 0 : index
    %c0_17 = arith.constant 0 : index
    %25 = vector.load %arg6[%c0_16, %c0_17] : memref<1x128xf32, #tpu.memory_space<vmem>>, vector<1x128xf32>
    %cst_18 = arith.constant 9.99999974E-6 : f32
    %26 = vector.broadcast %cst_18 : f32 to vector<1x128xf32>
    %27 = arith.addf %24, %26 : vector<1x128xf32>
    %28 = math.rsqrt %27 : vector<1x128xf32>
    %29 = arith.mulf %25, %28 : vector<1x128xf32>
    %c0_19 = arith.constant 0 : index
    %c0_20 = arith.constant 0 : index
    %30 = vector.load %arg7[%c0_19, %c0_20] : memref<1x128xf32, #tpu.memory_space<vmem>>, vector<1x128xf32>
    %31 = arith.mulf %17, %29 : vector<1x128xf32>
    %32 = arith.subf %30, %31 : vector<1x128xf32>
    %33 = vector.broadcast %29 : vector<1x128xf32> to vector<8x128xf32>
    %34 = arith.mulf %13, %33 : vector<8x128xf32>
    %35 = vector.broadcast %32 : vector<1x128xf32> to vector<8x128xf32>
    %36 = arith.addf %34, %35 : vector<8x128xf32>
    %c0_21 = arith.constant 0 : index
    %c0_22 = arith.constant 0 : index
    %37 = vector.load %arg8[%c0_21, %c0_22] : memref<128x128xf32, #tpu.memory_space<vmem>>, vector<128x128xf32>
    %cst_23 = arith.constant dense<0.000000e+00> : vector<8x128xf32>
    %38 = tpu.matmul %36, %37, %cst_23 {dimension_numbers = #tpu.dot_dimension_numbers<[1], [1], [0], [0], [0, 0, 1, 0], [], []>} : vector<8x128xf32>, vector<128x128xf32>, vector<8x128xf32> -> vector<8x128xf32>
    %c0_24 = arith.constant 0 : index
    %c0_25 = arith.constant 0 : index
    %39 = vector.load %arg9[%c0_24, %c0_25] : memref<1x128xf32, #tpu.memory_space<vmem>>, vector<1x128xf32>
    %40 = vector.broadcast %39 : vector<1x128xf32> to vector<8x128xf32>
    %41 = arith.addf %38, %40 : vector<8x128xf32>
    %c0_26 = arith.constant 0 : index
    %c0_27 = arith.constant 0 : index
    %42 = vector.load %arg2[%c0_26, %c0_27] : memref<128x128xf32, #tpu.memory_space<vmem>>, vector<128x128xf32>
    %cst_28 = arith.constant dense<0.000000e+00> : vector<8x128xf32>
    %43 = tpu.matmul %41, %42, %cst_28 {dimension_numbers = #tpu.dot_dimension_numbers<[1], [0], [0], [1], [0, 0, 1, 1], [], []>} : vector<8x128xf32>, vector<128x128xf32>, vector<8x128xf32> -> vector<8x128xf32>
    %44 = arith.mulf %1, %43 : vector<8x128xf32>
    %cst_29 = arith.constant dense<0.000000e+00> : vector<8xf32>
    %45 = vector.multi_reduction <add>, %44, %cst_29 [1] : vector<8x128xf32> to vector<8xf32>
    %46 = vector.shape_cast %45 : vector<8xf32> to vector<8x1xf32>
    %47 = vector.broadcast %46 : vector<8x1xf32> to vector<8x128xf32>
    %48 = arith.mulf %47, %1 : vector<8x128xf32>
    %49 = arith.subf %43, %48 : vector<8x128xf32>
    %c0_30 = arith.constant 0 : index
    %c0_31 = arith.constant 0 : index
    %c0_32 = arith.constant 0 : index
    %50 = vector.load %arg10[%c0_30, %c0_31, %c0_32] : memref<1x8x128xf32, #tpu.memory_space<vmem>>, vector<1x8x128xf32>
    %51 = vector.shape_cast %50 : vector<1x8x128xf32> to vector<8x128xf32>
    %52 = vector.shape_cast %49 : vector<8x128xf32> to vector<1x8x128xf32>
    tpu.vector_store %arg10[%c0_30, %c0_31, %c0_32], %52 {strides = array<i32>} : memref<1x8x128xf32, #tpu.memory_space<vmem>>, vector<1x8x128xf32>,
    return
  }
  func.func @transform_0(%arg0: i32) -> (i32, i32, i32) {
    %c0_i32 = arith.constant 0 : i32
    %c0_i32_0 = arith.constant 0 : i32
    %c0_i32_1 = arith.constant 0 : i32
    return %arg0, %c0_i32, %c0_i32_0 : i32, i32, i32
  }
  func.func @transform_1(%arg0: i32) -> (i32, i32) {
    %c0_i32 = arith.constant 0 : i32
    %c0_i32_0 = arith.constant 0 : i32
    %c0_i32_1 = arith.constant 0 : i32
    return %c0_i32, %c0_i32_0 : i32, i32
  }
  func.func @transform_2(%arg0: i32) -> (i32, i32) {
    %c0_i32 = arith.constant 0 : i32
    %c0_i32_0 = arith.constant 0 : i32
    %c0_i32_1 = arith.constant 0 : i32
    return %c0_i32, %c0_i32_0 : i32, i32
  }
  func.func @transform_3(%arg0: i32) -> (i32, i32) {
    %c0_i32 = arith.constant 0 : i32
    %c0_i32_0 = arith.constant 0 : i32
    %c0_i32_1 = arith.constant 0 : i32
    return %c0_i32, %c0_i32_0 : i32, i32
  }
  func.func @transform_4(%arg0: i32) -> (i32, i32) {
    %c0_i32 = arith.constant 0 : i32
    %c0_i32_0 = arith.constant 0 : i32
    %c0_i32_1 = arith.constant 0 : i32
    return %c0_i32, %c0_i32_0 : i32, i32
  }
  func.func @transform_5(%arg0: i32) -> (i32, i32) {
    %c0_i32 = arith.constant 0 : i32
    %c0_i32_0 = arith.constant 0 : i32
    %c0_i32_1 = arith.constant 0 : i32
    return %c0_i32, %c0_i32_0 : i32, i32
  }
  func.func @transform_6(%arg0: i32) -> (i32, i32) {
    %c0_i32 = arith.constant 0 : i32
    %c0_i32_0 = arith.constant 0 : i32
    %c0_i32_1 = arith.constant 0 : i32
    return %c0_i32, %c0_i32_0 : i32, i32
  }
  func.func @transform_7(%arg0: i32) -> (i32, i32) {
    %c0_i32 = arith.constant 0 : i32
    %c0_i32_0 = arith.constant 0 : i32
    %c0_i32_1 = arith.constant 0 : i32
    return %c0_i32, %c0_i32_0 : i32, i32
  }
  func.func @transform_8(%arg0: i32) -> (i32, i32) {
    %c0_i32 = arith.constant 0 : i32
    %c0_i32_0 = arith.constant 0 : i32
    %c0_i32_1 = arith.constant 0 : i32
    return %c0_i32, %c0_i32_0 : i32, i32
  }
  func.func @transform_9(%arg0: i32) -> (i32, i32, i32) {
    %c0_i32 = arith.constant 0 : i32
    %c0_i32_0 = arith.constant 0 : i32
    %c0_i32_1 = arith.constant 0 : i32
    return %arg0, %c0_i32, %c0_i32_0 : i32, i32, i32
  }
}

</mosaic_0001>

<llo_original>
// kernel: tpu_custom_call.1
$region0: #{tpu_custom_call.1}
  #allocation0 [shape = 'u32[]', space=smem, size = 0x4, offset = 0x4, fixed_abs, tag = 'smem constant byte address 0x4 - core index']
  #allocation1 [shape = 'u32[144,128]{1,0:T(1,128)}', space=vmem, size = 0x12000, scoped, tag = 'internal scratch']
  %s0 = inlined_call_operand.hbm [shape: f32[4,8,128], index: 0, kind: input, shape index: {}]
  %s1 = inlined_call_operand.hbm [shape: f32[128,128], index: 1, kind: input, shape index: {}]
  %s2 = inlined_call_operand.vmem [shape: f32[1,128], index: 2, kind: input, shape index: {}]
  %s3 = inlined_call_operand.hbm [shape: f32[128,128], index: 3, kind: input, shape index: {}]
  %s4 = inlined_call_operand.vmem [shape: f32[1,128], index: 4, kind: input, shape index: {}]
  %s5 = inlined_call_operand.vmem [shape: f32[1,128], index: 5, kind: input, shape index: {}]
  %s6 = inlined_call_operand.vmem [shape: f32[1,128], index: 6, kind: input, shape index: {}]
  %s7 = inlined_call_operand.hbm [shape: f32[128,128], index: 7, kind: input, shape index: {}]
  %s8 = inlined_call_operand.vmem [shape: f32[1,128], index: 8, kind: input, shape index: {}]
  %s9 = inlined_call_operand.hbm [shape: f32[4,8,128], index: 9, kind: output, shape index: {}]
  %s10 = sld [smem:[#allocation0]]
  $region85: #{tpu_custom_call.1} parent=0
    _
  %s12 = ssub.s32 1, %s10
  %s13 = scalar_select 0, %s12, %s10
  $region1: #{tpu_custom_call.1} parent=0
    #allocation2 [shape = 'u8[8192]{0}', space=vmem, size = 0x2000, scoped, tag = 'input window, operand 0']
    #allocation3 [shape = 's32[2]{0}', space=sflag, size = 0x8, scoped, tag = 'scoped memory for tpu_custom_call.1']
    #allocation4 [shape = 's32[2]{0}', space=sflag, size = 0x8, scoped, tag = 'scoped memory for tpu_custom_call.1']
    #allocation5 [shape = 'u8[65536]{0}', space=vmem, size = 0x10000, scoped, tag = 'input window, operand 1, single buffered']
    #allocation6 [shape = 's32[1]{0}', space=sflag, size = 0x4, scoped, tag = 'scoped memory for tpu_custom_call.1']
    #allocation7 [shape = 'u8[65536]{0}', space=vmem, size = 0x10000, scoped, tag = 'input window, operand 3, single buffered']
    #allocation8 [shape = 'u8[65536]{0}', space=vmem, size = 0x10000, scoped, tag = 'input window, operand 7, single buffered']
    #allocation9 [shape = 's32[1]{0}', space=sflag, size = 0x4, scoped, tag = 'scoped memory for tpu_custom_call.1']
    #allocation10 [shape = 'u8[8192]{0}', space=vmem, size = 0x2000, scoped, tag = 'output window, operand 0']
    %14 = vsyncpa [#allocation3], 0
    %s15 = scalar_lea.sflag [#allocation3], 1
    %16 = vsyncpa %s15, 0
    %17 = vsyncpa [#allocation6], 0
    %18 = vsyncpa [#allocation9], 0
    %19 = vsyncpa [#allocation4], 0
    %s20 = scalar_lea.sflag [#allocation4], 1
    %21 = vsyncpa %s20, 0
    loop: start=0, step=1, limit=6
    $region2: #{tpu_custom_call.1} parent=1 // loop_pre_header
      _
    $region3: #{tpu_custom_call.1} parent=1 // loop_header
      %s23 = sphi 0, %s27
      %p24 = scmp.ge.s32.totalorder %s23, 6
      %s33 = sphi 0, %s35
      %s36 = sphi 0, %s33
      %s37 = sphi 0, %s36
      %s53 = sphi 0, %s37
      %s57 = sphi 0, %s57
      %s59 = sphi 0, %s57
      %s60 = sphi 0, %s59
      %s74 = sphi 0, %s60
      %s78 = sphi 0, %s78
      %s80 = sphi 0, %s78
      %s81 = sphi 0, %s80
      %s95 = sphi 0, %s81
      %s99 = sphi 0, %s99
      %s101 = sphi 0, %s99
      %s102 = sphi 0, %s101
      %s116 = sphi 0, %s102
      %s120 = sphi 0, %s120
      %s122 = sphi 0, %s120
      %s123 = sphi 0, %s122
      %s137 = sphi 0, %s123
      %s141 = sphi 0, %s141
      %s143 = sphi 0, %s141
      %s144 = sphi 0, %s143
      %s158 = sphi 0, %s144
      %s162 = sphi 0, %s162
      %s164 = sphi 0, %s162
      %s165 = sphi 0, %s164
      %s179 = sphi 0, %s165
      %s183 = sphi 0, %s183
      %s185 = sphi 0, %s183
      %s186 = sphi 0, %s185
      %s200 = sphi 0, %s186
      %s204 = sphi 0, %s204
      %s206 = sphi 0, %s204
      %s207 = sphi 0, %s206
      %s221 = sphi 0, %s207
      %s227 = sphi 0, %s229
      %s230 = sphi 0, %s227
      %s231 = sphi 0, %s230
      %s247 = sphi 0, %s231
    $region4: #{tpu_custom_call.1} parent=1 // loop_header_branch
      %26 = sbr.rel (%p24) target = $region8
    $region5: #{tpu_custom_call.1} parent=1 // loop_body
      %s28 = ssub.s32 %s23, 1
      %s29 = ssub.s32 %s23, 2
      %s30 = sadd.s32 %s23, 1
      %s31 = ssub.s32 %s23, %s30
      %p32 = scmp.eq.s32.totalorder %s31, 0
      %s34 = sadd.s32 %s33, 1
      %s35 = scalar_select %p32, %s33, %s34
      %p38 = pneg %p32
      %p39 = scmp.eq.s32.totalorder %s23, 3
      %p40 = por %p38, %p39
      %p41 = scmp.ne.s32.totalorder %s33, %s36
      %p42 = scmp.eq.s32.totalorder %s23, 0
      %p43 = por %p41, %p42
      %p44 = scmp.ne.s32.totalorder %s33, %s36
      %p45 = scmp.eq.s32.totalorder %s28, 3
      %p46 = por %p44, %p45
      %p47 = scmp.ne.s32.totalorder %s36, %s37
      %p48 = scmp.eq.s32.totalorder %s28, 0
      %p49 = por %p47, %p48
      %p50 = scmp.ne.s32.totalorder %s36, %s37
      %p51 = scmp.eq.s32.totalorder %s29, 3
      %p52 = por %p50, %p51
      %p54 = scmp.ne.s32.totalorder %s37, %s53
      %p55 = scmp.eq.s32.totalorder %s29, 0
      %p56 = por %p54, %p55
      %s58 = sadd.s32 %s57, 1
      %p61 = scmp.eq.s32.totalorder %s23, 3
      %p62 = scmp.ne.s32.totalorder %s57, %s59
      %p63 = scmp.eq.s32.totalorder %s23, 0
      %p64 = por %p62, %p63
      %p65 = scmp.ne.s32.totalorder %s57, %s59
      %p66 = scmp.eq.s32.totalorder %s28, 3
      %p67 = por %p65, %p66
      %p68 = scmp.ne.s32.totalorder %s59, %s60
      %p69 = scmp.eq.s32.totalorder %s28, 0
      %p70 = por %p68, %p69
      %p71 = scmp.ne.s32.totalorder %s59, %s60
      %p72 = scmp.eq.s32.totalorder %s29, 3
      %p73 = por %p71, %p72
      %p75 = scmp.ne.s32.totalorder %s60, %s74
      %p76 = scmp.eq.s32.totalorder %s29, 0
      %p77 = por %p75, %p76
      %s79 = sadd.s32 %s78, 1
      %p82 = scmp.eq.s32.totalorder %s23, 3
      %p83 = scmp.ne.s32.totalorder %s78, %s80
      %p84 = scmp.eq.s32.totalorder %s23, 0
      %p85 = por %p83, %p84
      %p86 = scmp.ne.s32.totalorder %s78, %s80
      %p87 = scmp.eq.s32.totalorder %s28, 3
      %p88 = por %p86, %p87
      %p89 = scmp.ne.s32.totalorder %s80, %s81
      %p90 = scmp.eq.s32.totalorder %s28, 0
      %p91 = por %p89, %p90
      %p92 = scmp.ne.s32.totalorder %s80, %s81
      %p93 = scmp.eq.s32.totalorder %s29, 3
      %p94 = por %p92, %p93
      %p96 = scmp.ne.s32.totalorder %s81, %s95
      %p97 = scmp.eq.s32.totalorder %s29, 0
      %p98 = por %p96, %p97
      %s100 = sadd.s32 %s99, 1
      %p103 = scmp.eq.s32.totalorder %s23, 3
      %p104 = scmp.ne.s32.totalorder %s99, %s101
      %p105 = scmp.eq.s32.totalorder %s23, 0
      %p106 = por %p104, %p105
      %p107 = scmp.ne.s32.totalorder %s99, %s101
      %p108 = scmp.eq.s32.totalorder %s28, 3
      %p109 = por %p107, %p108
      %p110 = scmp.ne.s32.totalorder %s101, %s102
      %p111 = scmp.eq.s32.totalorder %s28, 0
      %p112 = por %p110, %p111
      %p113 = scmp.ne.s32.totalorder %s101, %s102
      %p114 = scmp.eq.s32.totalorder %s29, 3
      %p115 = por %p113, %p114
      %p117 = scmp.ne.s32.totalorder %s102, %s116
      %p118 = scmp.eq.s32.totalorder %s29, 0
      %p119 = por %p117, %p118
      %s121 = sadd.s32 %s120, 1
      %p124 = scmp.eq.s32.totalorder %s23, 3
      %p125 = scmp.ne.s32.totalorder %s120, %s122
      %p126 = scmp.eq.s32.totalorder %s23, 0
      %p127 = por %p125, %p126
      %p128 = scmp.ne.s32.totalorder %s120, %s122
      %p129 = scmp.eq.s32.totalorder %s28, 3
      %p130 = por %p128, %p129
      %p131 = scmp.ne.s32.totalorder %s122, %s123
      %p132 = scmp.eq.s32.totalorder %s28, 0
      %p133 = por %p131, %p132
      %p134 = scmp.ne.s32.totalorder %s122, %s123
      %p135 = scmp.eq.s32.totalorder %s29, 3
      %p136 = por %p134, %p135
      %p138 = scmp.ne.s32.totalorder %s123, %s137
      %p139 = scmp.eq.s32.totalorder %s29, 0
      %p140 = por %p138, %p139
      %s142 = sadd.s32 %s141, 1
      %p145 = scmp.eq.s32.totalorder %s23, 3
      %p146 = scmp.ne.s32.totalorder %s141, %s143
      %p147 = scmp.eq.s32.totalorder %s23, 0
      %p148 = por %p146, %p147
      %p149 = scmp.ne.s32.totalorder %s141, %s143
      %p150 = scmp.eq.s32.totalorder %s28, 3
      %p151 = por %p149, %p150
      %p152 = scmp.ne.s32.totalorder %s143, %s144
      %p153 = scmp.eq.s32.totalorder %s28, 0
      %p154 = por %p152, %p153
      %p155 = scmp.ne.s32.totalorder %s143, %s144
      %p156 = scmp.eq.s32.totalorder %s29, 3
      %p157 = por %p155, %p156
      %p159 = scmp.ne.s32.totalorder %s144, %s158
      %p160 = scmp.eq.s32.totalorder %s29, 0
      %p161 = por %p159, %p160
      %s163 = sadd.s32 %s162, 1
      %p166 = scmp.eq.s32.totalorder %s23, 3
      %p167 = scmp.ne.s32.totalorder %s162, %s164
      %p168 = scmp.eq.s32.totalorder %s23, 0
      %p169 = por %p167, %p168
      %p170 = scmp.ne.s32.totalorder %s162, %s164
      %p171 = scmp.eq.s32.totalorder %s28, 3
      %p172 = por %p170, %p171
      %p173 = scmp.ne.s32.totalorder %s164, %s165
      %p174 = scmp.eq.s32.totalorder %s28, 0
      %p175 = por %p173, %p174
      %p176 = scmp.ne.s32.totalorder %s164, %s165
      %p177 = scmp.eq.s32.totalorder %s29, 3
      %p178 = por %p176, %p177
      %p180 = scmp.ne.s32.totalorder %s165, %s179
      %p181 = scmp.eq.s32.totalorder %s29, 0
      %p182 = por %p180, %p181
      %s184 = sadd.s32 %s183, 1
      %p187 = scmp.eq.s32.totalorder %s23, 3
      %p188 = scmp.ne.s32.totalorder %s183, %s185
      %p189 = scmp.eq.s32.totalorder %s23, 0
      %p190 = por %p188, %p189
      %p191 = scmp.ne.s32.totalorder %s183, %s185
      %p192 = scmp.eq.s32.totalorder %s28, 3
      %p193 = por %p191, %p192
      %p194 = scmp.ne.s32.totalorder %s185, %s186
      %p195 = scmp.eq.s32.totalorder %s28, 0
      %p196 = por %p194, %p195
      %p197 = scmp.ne.s32.totalorder %s185, %s186
      %p198 = scmp.eq.s32.totalorder %s29, 3
      %p199 = por %p197, %p198
      %p201 = scmp.ne.s32.totalorder %s186, %s200
      %p202 = scmp.eq.s32.totalorder %s29, 0
      %p203 = por %p201, %p202
      %s205 = sadd.s32 %s204, 1
      %p208 = scmp.eq.s32.totalorder %s23, 3
      %p209 = scmp.ne.s32.totalorder %s204, %s206
      %p210 = scmp.eq.s32.totalorder %s23, 0
      %p211 = por %p209, %p210
      %p212 = scmp.ne.s32.totalorder %s204, %s206
      %p213 = scmp.eq.s32.totalorder %s28, 3
      %p214 = por %p212, %p213
      %p215 = scmp.ne.s32.totalorder %s206, %s207
      %p216 = scmp.eq.s32.totalorder %s28, 0
      %p217 = por %p215, %p216
      %p218 = scmp.ne.s32.totalorder %s206, %s207
      %p219 = scmp.eq.s32.totalorder %s29, 3
      %p220 = por %p218, %p219
      %p222 = scmp.ne.s32.totalorder %s207, %s221
      %p223 = scmp.eq.s32.totalorder %s29, 0
      %p224 = por %p222, %p223
      %s225 = ssub.s32 %s23, %s30
      %p226 = scmp.eq.s32.totalorder %s225, 0
      %s228 = sadd.s32 %s227, 1
      %s229 = scalar_select %p226, %s227, %s228
      %p232 = pneg %p226
      %p233 = scmp.eq.s32.totalorder %s23, 3
      %p234 = por %p232, %p233
      %p235 = scmp.ne.s32.totalorder %s227, %s230
      %p236 = scmp.eq.s32.totalorder %s23, 0
      %p237 = por %p235, %p236
      %p238 = scmp.ne.s32.totalorder %s227, %s230
      %p239 = scmp.eq.s32.totalorder %s28, 3
      %p240 = por %p238, %p239
      %p241 = scmp.ne.s32.totalorder %s230, %s231
      %p242 = scmp.eq.s32.totalorder %s28, 0
      %p243 = por %p241, %p242
      %p244 = scmp.ne.s32.totalorder %s230, %s231
      %p245 = scmp.eq.s32.totalorder %s29, 3
      %p246 = por %p244, %p245
      %p248 = scmp.ne.s32.totalorder %s231, %s247
      %p249 = scmp.eq.s32.totalorder %s29, 0
      %p250 = por %p248, %p249
      %p251 = scmp.le.s32.totalorder 1, %s23
      %p252 = scmp.lt.s32.totalorder %s23, 5
      %p253 = pnand %p251, %p252
      %p254 = pneg %p253
      // Predicated region
      $region9: #{tpu_custom_call.1} parent=5 // pred_check
        _
      $region10: #{tpu_custom_call.1} parent=5 // pred_check_branch
        %256 = sbr.rel (%p253) target = $region12
      $region11: #{tpu_custom_call.1} parent=5 // pred_region
        %s257 = ssub.s32 %s23, 1
        // Predicated region
        $region13: #{tpu_custom_call.1} parent=11 // pred_check
          %p258 = pneg %p70
        $region14: #{tpu_custom_call.1} parent=11 // pred_check_branch
          %260 = sbr.rel (%p258) target = $region16
        $region15: #{tpu_custom_call.1} parent=11 // pred_region
          %s262 = ssub.s32 2048, 2048
          %263 = vsyncadd [#allocation6], %s262
          %s264 = sshll.u32 [#allocation5], 4
          %s265 = int_to_ptr.vmem [resolvable:$true] %s264
          %270 = dma.hbm_to_vmem [thread:$0]  %s1, 2048, %s265, [#allocation6], 128, 128, 8
        $region16: #{tpu_custom_call.1} parent=11 // pred_fallthru
          _
        // Predicated region
        $region17: #{tpu_custom_call.1} parent=11 // pred_check
          %p271 = pneg %p91
        $region18: #{tpu_custom_call.1} parent=11 // pred_check_branch
          %273 = sbr.rel (%p271) target = $region20
        $region19: #{tpu_custom_call.1} parent=11 // pred_region
          _
        $region20: #{tpu_custom_call.1} parent=11 // pred_fallthru
          _
        // Predicated region
        $region21: #{tpu_custom_call.1} parent=11 // pred_check
          %p274 = pneg %p112
        $region22: #{tpu_custom_call.1} parent=11 // pred_check_branch
          %276 = sbr.rel (%p274) target = $region24
        $region23: #{tpu_custom_call.1} parent=11 // pred_region
          %s278 = ssub.s32 2048, 2048
          %279 = vsyncadd [#allocation6], %s278
          %s280 = sshll.u32 [#allocation7], 4
          %s281 = int_to_ptr.vmem [resolvable:$true] %s280
          %286 = dma.hbm_to_vmem [thread:$0]  %s3, 2048, %s281, [#allocation6], 128, 128, 8
        $region24: #{tpu_custom_call.1} parent=11 // pred_fallthru
          _
        // Predicated region
        $region25: #{tpu_custom_call.1} parent=11 // pred_check
          %p287 = pneg %p133
        $region26: #{tpu_custom_call.1} parent=11 // pred_check_branch
          %289 = sbr.rel (%p287) target = $region28
        $region27: #{tpu_custom_call.1} parent=11 // pred_region
          _
        $region28: #{tpu_custom_call.1} parent=11 // pred_fallthru
          _
        // Predicated region
        $region29: #{tpu_custom_call.1} parent=11 // pred_check
          %p290 = pneg %p154
        $region30: #{tpu_custom_call.1} parent=11 // pred_check_branch
          %292 = sbr.rel (%p290) target = $region32
        $region31: #{tpu_custom_call.1} parent=11 // pred_region
          _
        $region32: #{tpu_custom_call.1} parent=11 // pred_fallthru
          _
        // Predicated region
        $region33: #{tpu_custom_call.1} parent=11 // pred_check
          %p293 = pneg %p175
        $region34: #{tpu_custom_call.1} parent=11 // pred_check_branch
          %295 = sbr.rel (%p293) target = $region36
        $region35: #{tpu_custom_call.1} parent=11 // pred_region
          _
        $region36: #{tpu_custom_call.1} parent=11 // pred_fallthru
          _
        // Predicated region
        $region37: #{tpu_custom_call.1} parent=11 // pred_check
          %p296 = pneg %p196
        $region38: #{tpu_custom_call.1} parent=11 // pred_check_branch
          %298 = sbr.rel (%p296) target = $region40
        $region39: #{tpu_custom_call.1} parent=11 // pred_region
          %s300 = ssub.s32 2048, 2048
          %301 = vsyncadd [#allocation9], %s300
          %s302 = sshll.u32 [#allocation8], 4
          %s303 = int_to_ptr.vmem [resolvable:$true] %s302
          %308 = dma.hbm_to_vmem [thread:$0]  %s7, 2048, %s303, [#allocation9], 128, 128, 8
        $region40: #{tpu_custom_call.1} parent=11 // pred_fallthru
          _
        // Predicated region
        $region41: #{tpu_custom_call.1} parent=11 // pred_check
          %p309 = pneg %p217
        $region42: #{tpu_custom_call.1} parent=11 // pred_check_branch
          %311 = sbr.rel (%p309) target = $region44
        $region43: #{tpu_custom_call.1} parent=11 // pred_region
          _
        $region44: #{tpu_custom_call.1} parent=11 // pred_fallthru
          _
      $region12: #{tpu_custom_call.1} parent=5 // pred_fallthru
        _
      %p312 = scmp.lt.s32.totalorder %s23, 4
      // Predicated region
      $region45: #{tpu_custom_call.1} parent=5 // pred_check
        %p313 = pneg %p312
      $region46: #{tpu_custom_call.1} parent=5 // pred_check_branch
        %315 = sbr.rel (%p313) target = $region48
      $region47: #{tpu_custom_call.1} parent=5 // pred_region
        // Predicated region
        $region49: #{tpu_custom_call.1} parent=47 // pred_check
          %p316 = pneg %p43
        $region50: #{tpu_custom_call.1} parent=47 // pred_check_branch
          %318 = sbr.rel (%p316) target = $region52
        $region51: #{tpu_custom_call.1} parent=47 // pred_region
          %s319 = sand.u32 %s33, 1
          %s320 = scalar_lea.sflag [#allocation3], %s319
          %s321 = sand.u32 %s33, 1
          %s322 = smul.addr %s321, 8
          %s323 = scalar_lea.vmem [#allocation2], %s322
          %s325 = ssub.s32 128, 128
          %326 = vsyncadd %s320, %s325
          %s327 = smul.addr %s23, 128
          %s328 = scalar_lea.hbm %s0, %s327
          %s330 = sshll.u32 %s323, 4
          %s331 = int_to_ptr.vmem [resolvable:$true] %s330
          %333 = dma.hbm_to_vmem [thread:$0]  %s328, 128, %s331, %s320
        $region52: #{tpu_custom_call.1} parent=47 // pred_fallthru
          _
      $region48: #{tpu_custom_call.1} parent=5 // pred_fallthru
        _
      %p334 = scmp.le.s32.totalorder 1, %s23
      %p335 = scmp.lt.s32.totalorder %s23, 5
      %p336 = pnand %p334, %p335
      %p337 = pneg %p336
      // Predicated region
      $region53: #{tpu_custom_call.1} parent=5 // pred_check
        _
      $region54: #{tpu_custom_call.1} parent=5 // pred_check_branch
        %339 = sbr.rel (%p336) target = $region56
      $region55: #{tpu_custom_call.1} parent=5 // pred_region
        %s340 = ssub.s32 %s23, 1
        %s341 = sand.u32 %s36, 1
        %s342 = scalar_lea.sflag [#allocation3], %s341
        %s343 = sand.u32 %s36, 1
        %s344 = smul.addr %s343, 8
        %s345 = scalar_lea.vmem [#allocation2], %s344
        // Predicated region
        $region57: #{tpu_custom_call.1} parent=55 // pred_check
          %p346 = pneg %p49
        $region58: #{tpu_custom_call.1} parent=55 // pred_check_branch
          %348 = sbr.rel (%p346) target = $region60
        $region59: #{tpu_custom_call.1} parent=55 // pred_region
          %349 = dma.done %s342, 128
        $region60: #{tpu_custom_call.1} parent=55 // pred_fallthru
          _
        // Predicated region
        $region61: #{tpu_custom_call.1} parent=55 // pred_check
          %p350 = pneg %p70
        $region62: #{tpu_custom_call.1} parent=55 // pred_check_branch
          %352 = sbr.rel (%p350) target = $region64
        $region63: #{tpu_custom_call.1} parent=55 // pred_region
          %353 = dma.done [#allocation6], 2048
        $region64: #{tpu_custom_call.1} parent=55 // pred_fallthru
          _
        // Predicated region
        $region65: #{tpu_custom_call.1} parent=55 // pred_check
          %p354 = pneg %p112
        $region66: #{tpu_custom_call.1} parent=55 // pred_check_branch
          %356 = sbr.rel (%p354) target = $region68
        $region67: #{tpu_custom_call.1} parent=55 // pred_region
          %357 = dma.done [#allocation6], 2048
        $region68: #{tpu_custom_call.1} parent=55 // pred_fallthru
          _
        // Predicated region
        $region69: #{tpu_custom_call.1} parent=55 // pred_check
          %p358 = pneg %p196
        $region70: #{tpu_custom_call.1} parent=55 // pred_check_branch
          %360 = sbr.rel (%p358) target = $region72
        $region71: #{tpu_custom_call.1} parent=55 // pred_region
          %361 = dma.done [#allocation9], 2048
        $region72: #{tpu_custom_call.1} parent=55 // pred_fallthru
          _
        %s362 = sand.u32 %s36, 1
        %s363 = scalar_lea.sflag [#allocation3], %s362
        %s364 = sand.u32 %s36, 1
        %s365 = smul.addr %s364, 8
        %s366 = scalar_lea.vmem [#allocation2], %s365
        %p367 = pneg %p49
        %p368 = pneg %p46
        %p369 = pneg %p70
        %p370 = pneg %p67
        %p371 = pneg %p91
        %p372 = pneg %p88
        %p373 = pneg %p112
        %p374 = pneg %p109
        %p375 = pneg %p133
        %p376 = pneg %p130
        %p377 = pneg %p154
        %p378 = pneg %p151
        %p379 = pneg %p175
        %p380 = pneg %p172
        %p381 = pneg %p196
        %p382 = pneg %p193
        %p383 = pneg %p217
        %p384 = pneg %p214
        %p385 = pneg %p243
        %p386 = pneg %p240
        %s387 = sand.u32 %s230, 1
        %s388 = scalar_lea.sflag [#allocation4], %s387
        %s389 = sand.u32 %s230, 1
        %s390 = smul.addr %s389, 8
        %s391 = scalar_lea.vmem [#allocation10], %s390
        %v392 = vld [vmem:[%s345] sm:$0xff]
        %v393 = vld [vmem:[#allocation5] sm:$0xff]
        %v394 = vld [vmem:[#allocation5 + $0x8] sm:$0xff]
        %v395 = vld [vmem:[#allocation5 + $0x10] sm:$0xff]
        %v396 = vld [vmem:[#allocation5 + $0x18] sm:$0xff]
        %v397 = vld [vmem:[#allocation5 + $0x20] sm:$0xff]
        %v398 = vld [vmem:[#allocation5 + $0x28] sm:$0xff]
        %v399 = vld [vmem:[#allocation5 + $0x30] sm:$0xff]
        %v400 = vld [vmem:[#allocation5 + $0x38] sm:$0xff]
        %v401 = vld [vmem:[#allocation5 + $0x40] sm:$0xff]
        %v402 = vld [vmem:[#allocation5 + $0x48] sm:$0xff]
        %v403 = vld [vmem:[#allocation5 + $0x50] sm:$0xff]
        %v404 = vld [vmem:[#allocation5 + $0x58] sm:$0xff]
        %v405 = vld [vmem:[#allocation5 + $0x60] sm:$0xff]
        %v406 = vld [vmem:[#allocation5 + $0x68] sm:$0xff]
        %v407 = vld [vmem:[#allocation5 + $0x70] sm:$0xff]
        %v408 = vld [vmem:[#allocation5 + $0x78] sm:$0xff]
        %v409 = vld [vmem:[%s2] sm:$0x1]
        %v411 = vlaneseq
        %v412 = vshrl.u32 %v411, 7
        %v413 = vsub.s32 0, %v412
        %v414 = vrot.slane %v409, %v413
        %416 = vmatprep.subr.mxu0 0.0
        %417 = vmatpush1.xpose.msra.mxu0 %v393
        %418 = vmatprep.subr.mxu0 0.0
        %419 = vmatpush1.xpose.msra.mxu0 %v394
        %420 = vmatprep.subr.mxu0 0.0
        %421 = vmatpush1.xpose.msra.mxu0 %v395
        %422 = vmatprep.subr.mxu0 0.0
        %423 = vmatpush1.xpose.msra.mxu0 %v396
        %424 = vmatprep.subr.mxu0 0.0
        %425 = vmatpush1.xpose.msra.mxu0 %v397
        %426 = vmatprep.subr.mxu0 0.0
        %427 = vmatpush1.xpose.msra.mxu0 %v398
        %428 = vmatprep.subr.mxu0 0.0
        %429 = vmatpush1.xpose.msra.mxu0 %v399
        %430 = vmatprep.subr.mxu0 0.0
        %431 = vmatpush1.xpose.msra.mxu0 %v400
        %432 = vmatprep.subr.mxu0 0.0
        %433 = vmatpush1.xpose.msra.mxu0 %v401
        %434 = vmatprep.subr.mxu0 0.0
        %435 = vmatpush1.xpose.msra.mxu0 %v402
        %436 = vmatprep.subr.mxu0 0.0
        %437 = vmatpush1.xpose.msra.mxu0 %v403
        %438 = vmatprep.subr.mxu0 0.0
        %439 = vmatpush1.xpose.msra.mxu0 %v404
        %440 = vmatprep.subr.mxu0 0.0
        %441 = vmatpush1.xpose.msra.mxu0 %v405
        %442 = vmatprep.subr.mxu0 0.0
        %443 = vmatpush1.xpose.msra.mxu0 %v406
        %444 = vmatprep.subr.mxu0 0.0
        %445 = vmatpush1.xpose.msra.mxu0 %v407
        %446 = vmatprep.subr.mxu0 0.0
        %447 = vmatpush1.xpose.msra.mxu0 %v408
        %448 = vmatprep.subr.mxu0 0.0
        %449 = vmatpush1.xpose.msra.mxu0 0.0
        %450 = vmatprep.subr.mxu0 0.0
        %451 = vmatpush1.xpose.msra.mxu0 0.0
        %452 = vmatprep.subr.mxu0 0.0
        %453 = vmatpush1.xpose.msra.mxu0 0.0
        %454 = vmatprep.subr.mxu0 0.0
        %455 = vmatpush1.xpose.msra.mxu0 0.0
        %456 = vmatprep.subr.mxu0 0.0
        %457 = vmatpush1.xpose.msra.mxu0 0.0
        %458 = vmatprep.subr.mxu0 0.0
        %459 = vmatpush1.xpose.msra.mxu0 0.0
        %460 = vmatprep.subr.mxu0 0.0
        %461 = vmatpush1.xpose.msra.mxu0 0.0
        %462 = vmatprep.subr.mxu0 0.0
        %463 = vmatpush1.xpose.msra.mxu0 0.0
        %464 = vmatprep.subr.mxu0 0.0
        %465 = vmatpush1.xpose.msra.mxu0 0.0
        %466 = vmatprep.subr.mxu0 0.0
        %467 = vmatpush1.xpose.msra.mxu0 0.0
        %468 = vmatprep.subr.mxu0 0.0
        %469 = vmatpush1.xpose.msra.mxu0 0.0
        %470 = vmatprep.subr.mxu0 0.0
        %471 = vmatpush1.xpose.msra.mxu0 0.0
        %472 = vmatprep.subr.mxu0 0.0
        %473 = vmatpush1.xpose.msra.mxu0 0.0
        %474 = vmatprep.subr.mxu0 0.0
        %475 = vmatpush1.xpose.msra.mxu0 0.0
        %476 = vmatprep.subr.mxu0 0.0
        %477 = vmatpush1.xpose.msra.mxu0 0.0
        %478 = vmatprep.subr.mxu0 0.0
        %479 = vmatpush1.xpose.msra.mxu0 0.0
        %480 = vmatprep.mubr.f32.mxu0 0.0
        %481 = vmatmul.mubr.f32.gmra.mrb[0].mxu0 %v392
        %v482 = vpop.f32.mrb[0].mxu0
        %v483 = vadd.f32 %v414, %v482
        %v484 = vpop.f32.mrb[0].mxu0
        %485 = vdwg.mxu0
        %v486 = vld [vmem:[#allocation7] sm:$0xff]
        %v487 = vld [vmem:[#allocation7 + $0x8] sm:$0xff]
        %v488 = vld [vmem:[#allocation7 + $0x10] sm:$0xff]
        %v489 = vld [vmem:[#allocation7 + $0x18] sm:$0xff]
        %v490 = vld [vmem:[#allocation7 + $0x20] sm:$0xff]
        %v491 = vld [vmem:[#allocation7 + $0x28] sm:$0xff]
        %v492 = vld [vmem:[#allocation7 + $0x30] sm:$0xff]
        %v493 = vld [vmem:[#allocation7 + $0x38] sm:$0xff]
        %v494 = vld [vmem:[#allocation7 + $0x40] sm:$0xff]
        %v495 = vld [vmem:[#allocation7 + $0x48] sm:$0xff]
        %v496 = vld [vmem:[#allocation7 + $0x50] sm:$0xff]
        %v497 = vld [vmem:[#allocation7 + $0x58] sm:$0xff]
        %v498 = vld [vmem:[#allocation7 + $0x60] sm:$0xff]
        %v499 = vld [vmem:[#allocation7 + $0x68] sm:$0xff]
        %v500 = vld [vmem:[#allocation7 + $0x70] sm:$0xff]
        %v501 = vld [vmem:[#allocation7 + $0x78] sm:$0xff]
        %v502 = vld [vmem:[%s4] sm:$0x1]
        %v504 = vlaneseq
        %v505 = vshrl.u32 %v504, 7
        %v506 = vsub.s32 0, %v505
        %v507 = vrot.slane %v502, %v506
        %509 = vmatprep.subr.mxu0 0.0
        %510 = vmatpush1.xpose.msra.mxu0 %v486
        %511 = vmatprep.subr.mxu0 0.0
        %512 = vmatpush1.xpose.msra.mxu0 %v487
        %513 = vmatprep.subr.mxu0 0.0
        %514 = vmatpush1.xpose.msra.mxu0 %v488
        %515 = vmatprep.subr.mxu0 0.0
        %516 = vmatpush1.xpose.msra.mxu0 %v489
        %517 = vmatprep.subr.mxu0 0.0
        %518 = vmatpush1.xpose.msra.mxu0 %v490
        %519 = vmatprep.subr.mxu0 0.0
        %520 = vmatpush1.xpose.msra.mxu0 %v491
        %521 = vmatprep.subr.mxu0 0.0
        %522 = vmatpush1.xpose.msra.mxu0 %v492
        %523 = vmatprep.subr.mxu0 0.0
        %524 = vmatpush1.xpose.msra.mxu0 %v493
        %525 = vmatprep.subr.mxu0 0.0
        %526 = vmatpush1.xpose.msra.mxu0 %v494
        %527 = vmatprep.subr.mxu0 0.0
        %528 = vmatpush1.xpose.msra.mxu0 %v495
        %529 = vmatprep.subr.mxu0 0.0
        %530 = vmatpush1.xpose.msra.mxu0 %v496
        %531 = vmatprep.subr.mxu0 0.0
        %532 = vmatpush1.xpose.msra.mxu0 %v497
        %533 = vmatprep.subr.mxu0 0.0
        %534 = vmatpush1.xpose.msra.mxu0 %v498
        %535 = vmatprep.subr.mxu0 0.0
        %536 = vmatpush1.xpose.msra.mxu0 %v499
        %537 = vmatprep.subr.mxu0 0.0
        %538 = vmatpush1.xpose.msra.mxu0 %v500
        %539 = vmatprep.subr.mxu0 0.0
        %540 = vmatpush1.xpose.msra.mxu0 %v501
        %541 = vmatprep.subr.mxu0 0.0
        %542 = vmatpush1.xpose.msra.mxu0 0.0
        %543 = vmatprep.subr.mxu0 0.0
        %544 = vmatpush1.xpose.msra.mxu0 0.0
        %545 = vmatprep.subr.mxu0 0.0
        %546 = vmatpush1.xpose.msra.mxu0 0.0
        %547 = vmatprep.subr.mxu0 0.0
        %548 = vmatpush1.xpose.msra.mxu0 0.0
        %549 = vmatprep.subr.mxu0 0.0
        %550 = vmatpush1.xpose.msra.mxu0 0.0
        %551 = vmatprep.subr.mxu0 0.0
        %552 = vmatpush1.xpose.msra.mxu0 0.0
        %553 = vmatprep.subr.mxu0 0.0
        %554 = vmatpush1.xpose.msra.mxu0 0.0
        %555 = vmatprep.subr.mxu0 0.0
        %556 = vmatpush1.xpose.msra.mxu0 0.0
        %557 = vmatprep.subr.mxu0 0.0
        %558 = vmatpush1.xpose.msra.mxu0 0.0
        %559 = vmatprep.subr.mxu0 0.0
        %560 = vmatpush1.xpose.msra.mxu0 0.0
        %561 = vmatprep.subr.mxu0 0.0
        %562 = vmatpush1.xpose.msra.mxu0 0.0
        %563 = vmatprep.subr.mxu0 0.0
        %564 = vmatpush1.xpose.msra.mxu0 0.0
        %565 = vmatprep.subr.mxu0 0.0
        %566 = vmatpush1.xpose.msra.mxu0 0.0
        %567 = vmatprep.subr.mxu0 0.0
        %568 = vmatpush1.xpose.msra.mxu0 0.0
        %569 = vmatprep.subr.mxu0 0.0
        %570 = vmatpush1.xpose.msra.mxu0 0.0
        %571 = vmatprep.subr.mxu0 0.0
        %572 = vmatpush1.xpose.msra.mxu0 0.0
        %573 = vmatprep.mubr.f32.mxu0 0.0
        %574 = vmatmul.mubr.f32.gmra.mrb[0].mxu0 %v483
        %v575 = vpop.f32.mrb[0].mxu0
        %v576 = vadd.f32 %v507, %v575
        %v577 = vpop.f32.mrb[0].mxu0
        %578 = vdwg.mxu0
        %v579 = vmax.f32 %v576, 0.0
        %v580 = vrot.slane %v579, 4
        %v581 = vadd.f32 %v579, %v580
        %v582 = vrot.slane %v581, 2
        %v583 = vadd.f32 %v581, %v582
        %v584 = vrot.slane %v583, 1
        %v585 = vadd.f32 %v583, %v584
        %v586 = vmul.f32 %v585, 0.125
        %v587 = vmul.f32 %v579, %v579
        %v588 = vrot.slane %v587, 4
        %v589 = vadd.f32 %v587, %v588
        %v590 = vrot.slane %v589, 2
        %v591 = vadd.f32 %v589, %v590
        %v592 = vrot.slane %v591, 1
        %v593 = vadd.f32 %v591, %v592
        %v594 = vmul.f32 %v593, 0.125
        %v595 = vmul.f32 %v586, %v586
        %v596 = vsub.f32 %v594, %v595
        %v597 = vld [vmem:[%s5] sm:$0x1]
        %v598 = vadd.f32 %v596, 1e-05
        %v599 = vrsqrt.pop %v598
        %v600 = vmul.f32 %v597, %v599
        %v601 = vld [vmem:[%s6] sm:$0x1]
        %v602 = vmul.f32 %v586, %v600
        %v603 = vsub.f32 %v601, %v602
        %v605 = vlaneseq
        %v606 = vshrl.u32 %v605, 7
        %v607 = vsub.s32 0, %v606
        %v608 = vrot.slane %v600, %v607
        %v610 = vmul.f32 %v579, %v608
        %v612 = vlaneseq
        %v613 = vshrl.u32 %v612, 7
        %v614 = vsub.s32 0, %v613
        %v615 = vrot.slane %v603, %v614
        %v617 = vadd.f32 %v610, %v615
        %v618 = vld [vmem:[#allocation8] sm:$0xff]
        %v619 = vld [vmem:[#allocation8 + $0x8] sm:$0xff]
        %v620 = vld [vmem:[#allocation8 + $0x10] sm:$0xff]
        %v621 = vld [vmem:[#allocation8 + $0x18] sm:$0xff]
        %v622 = vld [vmem:[#allocation8 + $0x20] sm:$0xff]
        %v623 = vld [vmem:[#allocation8 + $0x28] sm:$0xff]
        %v624 = vld [vmem:[#allocation8 + $0x30] sm:$0xff]
        %v625 = vld [vmem:[#allocation8 + $0x38] sm:$0xff]
        %v626 = vld [vmem:[#allocation8 + $0x40] sm:$0xff]
        %v627 = vld [vmem:[#allocation8 + $0x48] sm:$0xff]
        %v628 = vld [vmem:[#allocation8 + $0x50] sm:$0xff]
        %v629 = vld [vmem:[#allocation8 + $0x58] sm:$0xff]
        %v630 = vld [vmem:[#allocation8 + $0x60] sm:$0xff]
        %v631 = vld [vmem:[#allocation8 + $0x68] sm:$0xff]
        %v632 = vld [vmem:[#allocation8 + $0x70] sm:$0xff]
        %v633 = vld [vmem:[#allocation8 + $0x78] sm:$0xff]
        %v634 = vld [vmem:[%s8] sm:$0x1]
        %v636 = vlaneseq
        %v637 = vshrl.u32 %v636, 7
        %v638 = vsub.s32 0, %v637
        %v639 = vrot.slane %v634, %v638
        %641 = vmatprep.subr.mxu0 0.0
        %642 = vmatpush1.xpose.msra.mxu0 %v618
        %643 = vmatprep.subr.mxu0 0.0
        %644 = vmatpush1.xpose.msra.mxu0 %v619
        %645 = vmatprep.subr.mxu0 0.0
        %646 = vmatpush1.xpose.msra.mxu0 %v620
        %647 = vmatprep.subr.mxu0 0.0
        %648 = vmatpush1.xpose.msra.mxu0 %v621
        %649 = vmatprep.subr.mxu0 0.0
        %650 = vmatpush1.xpose.msra.mxu0 %v622
        %651 = vmatprep.subr.mxu0 0.0
        %652 = vmatpush1.xpose.msra.mxu0 %v623
        %653 = vmatprep.subr.mxu0 0.0
        %654 = vmatpush1.xpose.msra.mxu0 %v624
        %655 = vmatprep.subr.mxu0 0.0
        %656 = vmatpush1.xpose.msra.mxu0 %v625
        %657 = vmatprep.subr.mxu0 0.0
        %658 = vmatpush1.xpose.msra.mxu0 %v626
        %659 = vmatprep.subr.mxu0 0.0
        %660 = vmatpush1.xpose.msra.mxu0 %v627
        %661 = vmatprep.subr.mxu0 0.0
        %662 = vmatpush1.xpose.msra.mxu0 %v628
        %663 = vmatprep.subr.mxu0 0.0
        %664 = vmatpush1.xpose.msra.mxu0 %v629
        %665 = vmatprep.subr.mxu0 0.0
        %666 = vmatpush1.xpose.msra.mxu0 %v630
        %667 = vmatprep.subr.mxu0 0.0
        %668 = vmatpush1.xpose.msra.mxu0 %v631
        %669 = vmatprep.subr.mxu0 0.0
        %670 = vmatpush1.xpose.msra.mxu0 %v632
        %671 = vmatprep.subr.mxu0 0.0
        %672 = vmatpush1.xpose.msra.mxu0 %v633
        %673 = vmatprep.subr.mxu0 0.0
        %674 = vmatpush1.xpose.msra.mxu0 0.0
        %675 = vmatprep.subr.mxu0 0.0
        %676 = vmatpush1.xpose.msra.mxu0 0.0
        %677 = vmatprep.subr.mxu0 0.0
        %678 = vmatpush1.xpose.msra.mxu0 0.0
        %679 = vmatprep.subr.mxu0 0.0
        %680 = vmatpush1.xpose.msra.mxu0 0.0
        %681 = vmatprep.subr.mxu0 0.0
        %682 = vmatpush1.xpose.msra.mxu0 0.0
        %683 = vmatprep.subr.mxu0 0.0
        %684 = vmatpush1.xpose.msra.mxu0 0.0
        %685 = vmatprep.subr.mxu0 0.0
        %686 = vmatpush1.xpose.msra.mxu0 0.0
        %687 = vmatprep.subr.mxu0 0.0
        %688 = vmatpush1.xpose.msra.mxu0 0.0
        %689 = vmatprep.subr.mxu0 0.0
        %690 = vmatpush1.xpose.msra.mxu0 0.0
        %691 = vmatprep.subr.mxu0 0.0
        %692 = vmatpush1.xpose.msra.mxu0 0.0
        %693 = vmatprep.subr.mxu0 0.0
        %694 = vmatpush1.xpose.msra.mxu0 0.0
        %695 = vmatprep.subr.mxu0 0.0
        %696 = vmatpush1.xpose.msra.mxu0 0.0
        %697 = vmatprep.subr.mxu0 0.0
        %698 = vmatpush1.xpose.msra.mxu0 0.0
        %699 = vmatprep.subr.mxu0 0.0
        %700 = vmatpush1.xpose.msra.mxu0 0.0
        %701 = vmatprep.subr.mxu0 0.0
        %702 = vmatpush1.xpose.msra.mxu0 0.0
        %703 = vmatprep.subr.mxu0 0.0
        %704 = vmatpush1.xpose.msra.mxu0 0.0
        %705 = vmatprep.mubr.f32.mxu0 0.0
        %706 = vmatmul.mubr.f32.gmra.mrb[0].mxu0 %v617
        %v707 = vpop.f32.mrb[0].mxu0
        %v708 = vadd.f32 %v639, %v707
        %v709 = vpop.f32.mrb[0].mxu0
        %710 = vdwg.mxu0
        %711 = vmatprep.subr.mxu0 0.0
        %712 = vmatpush1.msra.mxu0 %v393
        %713 = vmatprep.subr.mxu0 0.0
        %714 = vmatpush1.msra.mxu0 %v394
        %715 = vmatprep.subr.mxu0 0.0
        %716 = vmatpush1.msra.mxu0 %v395
        %717 = vmatprep.subr.mxu0 0.0
        %718 = vmatpush1.msra.mxu0 %v396
        %719 = vmatprep.subr.mxu0 0.0
        %720 = vmatpush1.msra.mxu0 %v397
        %721 = vmatprep.subr.mxu0 0.0
        %722 = vmatpush1.msra.mxu0 %v398
        %723 = vmatprep.subr.mxu0 0.0
        %724 = vmatpush1.msra.mxu0 %v399
        %725 = vmatprep.subr.mxu0 0.0
        %726 = vmatpush1.msra.mxu0 %v400
        %727 = vmatprep.subr.mxu0 0.0
        %728 = vmatpush1.msra.mxu0 %v401
        %729 = vmatprep.subr.mxu0 0.0
        %730 = vmatpush1.msra.mxu0 %v402
        %731 = vmatprep.subr.mxu0 0.0
        %732 = vmatpush1.msra.mxu0 %v403
        %733 = vmatprep.subr.mxu0 0.0
        %734 = vmatpush1.msra.mxu0 %v404
        %735 = vmatprep.subr.mxu0 0.0
        %736 = vmatpush1.msra.mxu0 %v405
        %737 = vmatprep.subr.mxu0 0.0
        %738 = vmatpush1.msra.mxu0 %v406
        %739 = vmatprep.subr.mxu0 0.0
        %740 = vmatpush1.msra.mxu0 %v407
        %741 = vmatprep.subr.mxu0 0.0
        %742 = vmatpush1.msra.mxu0 %v408
        %743 = vmatprep.subr.mxu0 0.0
        %744 = vmatpush1.msra.mxu0 0.0
        %745 = vmatprep.subr.mxu0 0.0
        %746 = vmatpush1.msra.mxu0 0.0
        %747 = vmatprep.subr.mxu0 0.0
        %748 = vmatpush1.msra.mxu0 0.0
        %749 = vmatprep.subr.mxu0 0.0
        %750 = vmatpush1.msra.mxu0 0.0
        %751 = vmatprep.subr.mxu0 0.0
        %752 = vmatpush1.msra.mxu0 0.0
        %753 = vmatprep.subr.mxu0 0.0
        %754 = vmatpush1.msra.mxu0 0.0
        %755 = vmatprep.subr.mxu0 0.0
        %756 = vmatpush1.msra.mxu0 0.0
        %757 = vmatprep.subr.mxu0 0.0
        %758 = vmatpush1.msra.mxu0 0.0
        %759 = vmatprep.subr.mxu0 0.0
        %760 = vmatpush1.msra.mxu0 0.0
        %761 = vmatprep.subr.mxu0 0.0
        %762 = vmatpush1.msra.mxu0 0.0
        %763 = vmatprep.subr.mxu0 0.0
        %764 = vmatpush1.msra.mxu0 0.0
        %765 = vmatprep.subr.mxu0 0.0
        %766 = vmatpush1.msra.mxu0 0.0
        %767 = vmatprep.subr.mxu0 0.0
        %768 = vmatpush1.msra.mxu0 0.0
        %769 = vmatprep.subr.mxu0 0.0
        %770 = vmatpush1.msra.mxu0 0.0
        %771 = vmatprep.subr.mxu0 0.0
        %772 = vmatpush1.msra.mxu0 0.0
        %773 = vmatprep.subr.mxu0 0.0
        %774 = vmatpush1.msra.mxu0 0.0
        %775 = vmatprep.mubr.f32.mxu0 0.0
        %776 = vmatmul.mubr.f32.gmra.mrb[0].mxu0 %v708
        %v777 = vpop.f32.mrb[0].mxu0
        %v778 = vadd.f32 0.0, %v777
        %v779 = vpop.f32.mrb[0].mxu0
        %780 = vdwg.mxu0
        %v781 = vmul.f32 %v392, %v778
        %782 = vadd.xlane.f32.xlu0 %v781
        %v783 = vpop.xlane.xlu0 %782
        %v784 = vmul.f32 %v783, %v392
        %v785 = vsub.f32 %v778, %v784
        %786 = vst [vmem:[%s391] sm:$0xff] %v785
        %s787 = sand.u32 %s230, 1
        %s788 = scalar_lea.sflag [#allocation4], %s787
        %s789 = sand.u32 %s230, 1
        %s790 = smul.addr %s789, 8
        %s791 = scalar_lea.vmem [#allocation10], %s790
        // Predicated region
        $region73: #{tpu_custom_call.1} parent=55 // pred_check
          %p792 = pneg %p240
        $region74: #{tpu_custom_call.1} parent=55 // pred_check_branch
          %794 = sbr.rel (%p792) target = $region76
        $region75: #{tpu_custom_call.1} parent=55 // pred_region
          %s796 = ssub.s32 128, 128
          %797 = vsyncadd %s788, %s796
          %s798 = smul.addr %s28, 128
          %s799 = scalar_lea.hbm %s9, %s798
          %s801 = sshll.u32 %s791, 4
          %s802 = int_to_ptr.vmem [resolvable:$true] %s801
          %804 = dma.vmem_to_hbm [thread:$0]  %s802, 128, %s799, %s788
        $region76: #{tpu_custom_call.1} parent=55 // pred_fallthru
          _
      $region56: #{tpu_custom_call.1} parent=5 // pred_fallthru
        _
      %p805 = scmp.le.s32.totalorder 2, %s23
      // Predicated region
      $region77: #{tpu_custom_call.1} parent=5 // pred_check
        %p806 = pneg %p805
      $region78: #{tpu_custom_call.1} parent=5 // pred_check_branch
        %808 = sbr.rel (%p806) target = $region80
      $region79: #{tpu_custom_call.1} parent=5 // pred_region
        %s809 = ssub.s32 %s23, 2
        // Predicated region
        $region81: #{tpu_custom_call.1} parent=79 // pred_check
          %p810 = pneg %p246
        $region82: #{tpu_custom_call.1} parent=79 // pred_check_branch
          %812 = sbr.rel (%p810) target = $region84
        $region83: #{tpu_custom_call.1} parent=79 // pred_region
          %s813 = sand.u32 %s231, 1
          %s814 = scalar_lea.sflag [#allocation4], %s813
          %s815 = sand.u32 %s231, 1
          %s816 = smul.addr %s815, 8
          %s817 = scalar_lea.vmem [#allocation10], %s816
          %818 = dma.done %s814, 128
        $region84: #{tpu_custom_call.1} parent=79 // pred_fallthru
          _
      $region80: #{tpu_custom_call.1} parent=5 // pred_fallthru
        _
    $region6: #{tpu_custom_call.1} parent=1 // loop_footer
      %s27 = sadd.s32 1, %s23
    $region7: #{tpu_custom_call.1} parent=1 // loop_footer_branch
      %22 = sbr.rel target = $region3
    $region8: #{tpu_custom_call.1} parent=1 // loop_exit
      _
    %819 = vsyncpa [#allocation3], 1
    %s820 = scalar_lea.sflag [#allocation3], 1
    %821 = vsyncpa %s820, 1
    %822 = vsyncpa [#allocation6], 1
    %823 = vsyncpa [#allocation9], 1
    %824 = vsyncpa [#allocation4], 1
    %s825 = scalar_lea.sflag [#allocation4], 1
    %826 = vsyncpa %s825, 1

</llo_original>
